<compile_context>
chip_gen: v5e
topology: v5e:2x2
jax: 0.10.0
libtpu: 0.0.40
codegen_flags: <defaults>
</compile_context>

<pallas_src>
import math
import functools

import jax
import jax.numpy as jnp
from jax.experimental import pallas as pl
from jax.experimental.pallas import tpu as pltpu


def _round_up(x, m):
    return ((x + m - 1) // m) * m


# ----------------------------------------------------------------------------
# Fused kernel: the whole LSTM stack (+ residual) in one pallas_call.
# Grid axis 0 = layer index (serial carry through seq_sc).
# ----------------------------------------------------------------------------
def residual_lstm_stack_kernel(x_ref, wih_ref, whh_ref, b_ref, out_ref,
                               seq_sc, xp_sc, h_sc, c_sc,
                               *, seq_len, batch_pad, hidden):
    """Refs:
      x_ref   : (T*Bp, H) f32   original input (resident; block index constant)
      wih_ref : (H, 4H)  bf16   this layer's fused W_ih^T   (gate order i,f,g,o)
      whh_ref : (H, 4H)  bf16   this layer's fused W_hh^T
      b_ref   : (1, 4H)  f32    this layer's b_ih + b_hh
      out_ref : (T*Bp, H) f32   final output (written on last layer only)
    Scratch (persist across the layer grid axis):
      seq_sc  : (T*Bp, H) bf16  current layer's input / output sequence
      xp_sc   : (T*Bp, 4H) f32  hoisted input projection for the whole sequence
      h_sc    : (Bp, H)  bf16   recurrent hidden state
      c_sc    : (Bp, H)  f32    recurrent cell state
    """
    H = hidden
    Bp = batch_pad
    layer = pl.program_id(0)

    @pl.when(layer == 0)
    def _():
        seq_sc[...] = x_ref[...].astype(seq_sc.dtype)

    # Hoisted, fused input projection for the entire sequence: one lane-dense
    # (T*Bp, H) @ (H, 4H) bf16 MXU matmul with f32 accumulation.
    xp_sc[...] = (
        jnp.dot(seq_sc[...], wih_ref[...],
                preferred_element_type=jnp.float32)
        + b_ref[...])

    h_sc[...] = jnp.zeros_like(h_sc)
    c_sc[...] = jnp.zeros_like(c_sc)

    @pl.loop(0, seq_len)
    def _(t):
        row = pl.multiple_of(t * Bp, Bp)          # aligned sublane offset

        # Single fused (Bp, H) @ (H, 4H) bf16 recurrent matmul per step.
        gates = xp_sc[pl.ds(row, Bp), :] + jnp.dot(
            h_sc[...], whh_ref[...], preferred_element_type=jnp.float32)

        # Full-width (Bp, 4H=128) EUP activations, then gate slices.
        sig = jax.nn.sigmoid(gates)
        tnh = jnp.tanh(gates)
        i_g = sig[:, 0:H]
        f_g = sig[:, H:2 * H]
        g_g = tnh[:, 2 * H:3 * H]
        o_g = sig[:, 3 * H:4 * H]

        c_new = f_g * c_sc[...] + i_g * g_g
        h_new = o_g * jnp.tanh(c_new)

        c_sc[...] = c_new
        h_bf = h_new.astype(seq_sc.dtype)
        h_sc[...] = h_bf
        # Overwrite in place: this becomes the next layer's input sequence
        # (xp_sc already captured everything this layer needed from seq_sc).
        seq_sc[pl.ds(row, Bp), :] = h_bf

    # Fused residual skip + the only HBM-facing store, on the final layer.
    @pl.when(layer == pl.num_programs(0) - 1)
    def _():
        out_ref[...] = (seq_sc[...].astype(jnp.float32)
                        + x_ref[...].astype(jnp.float32)).astype(out_ref.dtype)


# ----------------------------------------------------------------------------
# Wrapper: one pallas_call for the whole stack.
# ----------------------------------------------------------------------------
def run_residual_lstm_stack(x2d, wih_all, whh_all, b_all, *,
                            seq_len, batch_pad, hidden):
    """x2d: (T*Bp, H) time-major flattened f32.
       wih_all/whh_all: (L, H, 4H) bf16, b_all: (L, 1, 4H) f32."""
    TB, H = x2d.shape
    L = wih_all.shape[0]
    G = 4 * hidden
    assert TB == seq_len * batch_pad and H == hidden

    kernel = functools.partial(
        residual_lstm_stack_kernel,
        seq_len=seq_len, batch_pad=batch_pad, hidden=hidden)

    # Explicit VMEM budget (last dims < 128 are lane-padded to 128 in VMEM).
    lane = lambda n: _round_up(n, 128)
    vmem_bytes = (
        TB * lane(H) * 2                            # seq scratch (bf16)
        + TB * lane(G) * 4                          # hoisted projection (f32)
        + batch_pad * lane(H) * (2 + 4)             # h (bf16) + c (f32)
        + 2 * TB * lane(H) * 4                      # x input + output blocks
        + 2 * (2 * H * lane(G) * 2 + lane(G) * 4)   # double-buffered weights+bias
    )
    vmem_limit = int(min(max(2 * vmem_bytes, 4 << 20), 48 << 20))

    cost = pl.CostEstimate(
        flops=int(4 * L * TB * H * G),
        transcendentals=int(L * TB * (2 * G + H)),
        bytes_accessed=int(2 * TB * H * 4 + L * (2 * H * G * 2 + G * 4)),
    )

    return pl.pallas_call(
        kernel,
        out_shape=jax.ShapeDtypeStruct((TB, H), x2d.dtype),
        grid_spec=pltpu.PrefetchScalarGridSpec(
            num_scalar_prefetch=0,
            grid=(L,),                                          # serial layer loop
            in_specs=[
                pl.BlockSpec((TB, H), lambda l: (0, 0)),          # x (resident)
                pl.BlockSpec((None, H, G), lambda l: (l, 0, 0)),  # W_ih^T[l]
                pl.BlockSpec((None, H, G), lambda l: (l, 0, 0)),  # W_hh^T[l]
                pl.BlockSpec((None, 1, G), lambda l: (l, 0, 0)),  # bias[l]
            ],
            out_specs=pl.BlockSpec((TB, H), lambda l: (0, 0)),
            scratch_shapes=[
                pltpu.VMEM((TB, H), jnp.bfloat16),              # layer I/O seq
                pltpu.VMEM((TB, G), jnp.float32),               # x projection
                pltpu.VMEM((batch_pad, hidden), jnp.bfloat16),  # h_t
                pltpu.VMEM((batch_pad, hidden), jnp.float32),   # c_t
            ],
        ),
        compiler_params=pltpu.CompilerParams(
            dimension_semantics=("arbitrary",),     # layers are a serial carry
            vmem_limit_bytes=vmem_limit),
        cost_estimate=cost,
    )(x2d, wih_all, whh_all, b_all)


# ----------------------------------------------------------------------------
# Parameters (fused (H, 4H) layout, nn.LSTM-style uniform init; kept in f32,
# cast to bf16 for the kernel inside the forward wrapper)
# ----------------------------------------------------------------------------
def init_residual_network_params(key, num_cells, vector_size, layers_per_cell):
    """list[cell][layer] of dicts with fused, pre-transposed f32 weights:
       wih: (H, 4H), whh: (H, 4H), b: (1, 4H)   (gate order i, f, g, o)"""
    H = vector_size
    k = 1.0 / math.sqrt(H)
    params = []
    for _ in range(num_cells):
        cell_params = []
        for _ in range(layers_per_cell):
            key, k1, k2, k3, k4 = jax.random.split(key, 5)
            w_ih = jax.random.uniform(k1, (4 * H, H), jnp.float32, -k, k)
            w_hh = jax.random.uniform(k2, (4 * H, H), jnp.float32, -k, k)
            b_ih = jax.random.uniform(k3, (4 * H,), jnp.float32, -k, k)
            b_hh = jax.random.uniform(k4, (4 * H,), jnp.float32, -k, k)
            cell_params.append({
                "wih": w_ih.T,                      # (H, 4H): x @ wih
                "whh": w_hh.T,                      # (H, 4H): h @ whh
                "b": (b_ih + b_hh).reshape(1, 4 * H),
            })
        params.append(cell_params)
    return params


# ----------------------------------------------------------------------------
# Full forward pass (batch_first, like the PyTorch module)
# ----------------------------------------------------------------------------
def residual_network_forward(x_bth, params):
    """x_bth: (B, T, H) batch-first.  Returns (B, T, H)."""
    B, T, H = x_bth.shape
    Bp = _round_up(B, 8)                         # pad batch to 8 sublanes

    x_tbh = jnp.transpose(x_bth, (1, 0, 2))      # (T, B, H)
    if Bp != B:
        x_tbh = jnp.pad(x_tbh, ((0, 0), (0, Bp - B), (0, 0)))
    x2d = x_tbh.reshape(T * Bp, H)               # contiguous -> free reshape

    layers = [lp for cell_params in params for lp in cell_params]
    wih_all = jnp.stack([lp["wih"] for lp in layers]).astype(jnp.bfloat16)
    whh_all = jnp.stack([lp["whh"] for lp in layers]).astype(jnp.bfloat16)
    b_all = jnp.stack([lp["b"] for lp in layers])               # (L, 1, 4H) f32

    out2d = run_residual_lstm_stack(x2d, wih_all, whh_all, b_all,
                                    seq_len=T, batch_pad=Bp, hidden=H)

    out_tbh = out2d.reshape(T, Bp, H)[:, :B, :]
    return jnp.transpose(out_tbh, (1, 0, 2))     # (B, T, H)


# ----------------------------------------------------------------------------
# Pure-JAX f32 reference (PyTorch semantics) for correctness check
# ----------------------------------------------------------------------------
def lstm_layer_ref(x_tbh, wih, whh, b):
    T, B, H = x_tbh.shape

    def step(carry, x_t):
        h, c = carry
        g = x_t @ wih + h @ whh + b              # (B, 4H)
        i = jax.nn.sigmoid(g[:, 0:H])
        f = jax.nn.sigmoid(g[:, H:2 * H])
        gg = jnp.tanh(g[:, 2 * H:3 * H])
        o = jax.nn.sigmoid(g[:, 3 * H:4 * H])
        c = f * c + i * gg
        h = o * jnp.tanh(c)
        return (h, c), h

    init = (jnp.zeros((B, H), jnp.float32), jnp.zeros((B, H), jnp.float32))
    _, ys = jax.lax.scan(step, init, x_tbh)
    return ys


def residual_network_ref(x_bth, params):
    x_tbh = jnp.transpose(x_bth, (1, 0, 2))
    rnn_out = x_tbh
    for cell_params in params:
        for lp in cell_params:
            rnn_out = lstm_layer_ref(rnn_out, lp["wih"], lp["whh"], lp["b"])
    return jnp.transpose(x_tbh + rnn_out, (1, 0, 2))


# ----------------------------------------------------------------------------
if __name__ == "__main__":
    num_cells = 2
    vector_size = 32       # H
    layers_per_cell = 2
    batch = 2
    seq = 8

    key = jax.random.PRNGKey(0)
    key, pkey, xkey = jax.random.split(key, 3)

    params = init_residual_network_params(pkey, num_cells, vector_size,
                                          layers_per_cell)
    x = jax.random.normal(xkey, (batch, seq, vector_size), jnp.float32)

    out = jax.jit(residual_network_forward)(x, params)
    out = jax.block_until_ready(out)

    ref = residual_network_ref(x, params)
    assert out.shape == (batch, seq, vector_size)
    # bf16 MXU operands (f32 accumulation) -> loosened tolerance vs. f32 reference.
    max_err = jnp.max(jnp.abs(out - ref))
    assert jnp.allclose(out, ref, atol=5e-2, rtol=5e-2), (
        f"max abs err {max_err}")

    print("KERNEL_OK")
</pallas_src>

<mosaic_0001>
module attributes {stable_mosaic.version = 11 : i64} {
  func.func @residual_lstm_stack_kernel(%arg0: i32, %arg1: memref<64x32xf32, #tpu.memory_space<vmem>>, %arg2: memref<1x32x128xbf16, #tpu.memory_space<vmem>>, %arg3: memref<1x32x128xbf16, #tpu.memory_space<vmem>>, %arg4: memref<1x1x128xf32, #tpu.memory_space<vmem>>, %arg5: memref<64x32xf32, #tpu.memory_space<vmem>>, %arg6: memref<64x32xbf16, #tpu.memory_space<vmem>>, %arg7: memref<64x128xf32, #tpu.memory_space<vmem>>, %arg8: memref<8x32xbf16, #tpu.memory_space<vmem>>, %arg9: memref<8x32xf32, #tpu.memory_space<vmem>>) attributes {dimension_semantics = [#tpu.dimension_semantics<arbitrary>], iteration_bounds = array<i64: 4>, scalar_prefetch = 0 : i64, scratch_operands = 4 : i64, tpu.core_type = #tpu.core_type<tc>, window_params = [{pipeline_mode = #tpu.pipeline_mode<synchronous>, transform_indices = @transform_0, window_bounds = array<i64: 64, 32>}, {transform_indices = @transform_1, window_bounds = array<i64: 1, 32, 128>}, {transform_indices = @transform_2, window_bounds = array<i64: 1, 32, 128>}, {transform_indices = @transform_3, window_bounds = array<i64: 1, 1, 128>}, {pipeline_mode = #tpu.pipeline_mode<synchronous>, transform_indices = @transform_4, window_bounds = array<i64: 64, 32>}]} {
    %c0_i32 = arith.constant 0 : i32
    %0 = arith.cmpi eq, %arg0, %c0_i32 : i32
    %1 = arith.extui %0 : i1 to i32
    %c0_i32_0 = arith.constant 0 : i32
    %2 = arith.cmpi ne, %1, %c0_i32_0 : i32
    scf.if %2 {
      %c0_19 = arith.constant 0 : index
      %c0_20 = arith.constant 0 : index
      %20 = vector.load %arg1[%c0_19, %c0_20] : memref<64x32xf32, #tpu.memory_space<vmem>>, vector<64x32xf32>
      %21 = arith.truncf %20 : vector<64x32xf32> to vector<64x32xbf16>
      %c0_21 = arith.constant 0 : index
      %c0_22 = arith.constant 0 : index
      %22 = vector.load %arg6[%c0_21, %c0_22] : memref<64x32xbf16, #tpu.memory_space<vmem>>, vector<64x32xbf16>
      tpu.vector_store %arg6[%c0_21, %c0_22], %21 {strides = array<i32>} : memref<64x32xbf16, #tpu.memory_space<vmem>>, vector<64x32xbf16>,
    } else {
    }
    %c0 = arith.constant 0 : index
    %c0_1 = arith.constant 0 : index
    %3 = vector.load %arg6[%c0, %c0_1] : memref<64x32xbf16, #tpu.memory_space<vmem>>, vector<64x32xbf16>
    %c0_2 = arith.constant 0 : index
    %c0_3 = arith.constant 0 : index
    %c0_4 = arith.constant 0 : index
    %4 = vector.load %arg2[%c0_2, %c0_3, %c0_4] : memref<1x32x128xbf16, #tpu.memory_space<vmem>>, vector<1x32x128xbf16>
    %5 = vector.shape_cast %4 : vector<1x32x128xbf16> to vector<32x128xbf16>
    %cst = arith.constant dense<0.000000e+00> : vector<64x128xf32>
    %6 = tpu.matmul %3, %5, %cst {dimension_numbers = #tpu.dot_dimension_numbers<[1], [0], [0], [1], [0, 0, 1, 1], [], []>} : vector<64x32xbf16>, vector<32x128xbf16>, vector<64x128xf32> -> vector<64x128xf32>
    %c0_5 = arith.constant 0 : index
    %c0_6 = arith.constant 0 : index
    %c0_7 = arith.constant 0 : index
    %7 = vector.load %arg4[%c0_5, %c0_6, %c0_7] : memref<1x1x128xf32, #tpu.memory_space<vmem>>, vector<1x1x128xf32>
    %8 = vector.shape_cast %7 : vector<1x1x128xf32> to vector<1x128xf32>
    %9 = vector.broadcast %8 : vector<1x128xf32> to vector<64x128xf32>
    %10 = arith.addf %6, %9 : vector<64x128xf32>
    %c0_8 = arith.constant 0 : index
    %c0_9 = arith.constant 0 : index
    %11 = vector.load %arg7[%c0_8, %c0_9] : memref<64x128xf32, #tpu.memory_space<vmem>>, vector<64x128xf32>
    tpu.vector_store %arg7[%c0_8, %c0_9], %10 {strides = array<i32>} : memref<64x128xf32, #tpu.memory_space<vmem>>, vector<64x128xf32>,
    %cst_10 = arith.constant 0.000000e+00 : bf16
    %12 = vector.broadcast %cst_10 : bf16 to vector<8x32xbf16>
    %c0_11 = arith.constant 0 : index
    %c0_12 = arith.constant 0 : index
    %13 = vector.load %arg8[%c0_11, %c0_12] : memref<8x32xbf16, #tpu.memory_space<vmem>>, vector<8x32xbf16>
    tpu.vector_store %arg8[%c0_11, %c0_12], %12 {strides = array<i32>} : memref<8x32xbf16, #tpu.memory_space<vmem>>, vector<8x32xbf16>,
    %cst_13 = arith.constant 0.000000e+00 : f32
    %14 = vector.broadcast %cst_13 : f32 to vector<8x32xf32>
    %c0_14 = arith.constant 0 : index
    %c0_15 = arith.constant 0 : index
    %15 = vector.load %arg9[%c0_14, %c0_15] : memref<8x32xf32, #tpu.memory_space<vmem>>, vector<8x32xf32>
    tpu.vector_store %arg9[%c0_14, %c0_15], %14 {strides = array<i32>} : memref<8x32xf32, #tpu.memory_space<vmem>>, vector<8x32xf32>,
    %c0_i32_16 = arith.constant 0 : i32
    %c8_i32 = arith.constant 8 : i32
    %16 = arith.addi %c0_i32_16, %c8_i32 : i32
    %c1_i32 = arith.constant 1 : i32
    scf.for %arg10 = %c0_i32_16 to %16 step %c1_i32  : i32 {
      %c1_i32_19 = arith.constant 1 : i32
      %20 = arith.muli %arg10, %c1_i32_19 : i32
      %c0_i32_20 = arith.constant 0 : i32
      %21 = arith.addi %c0_i32_20, %20 : i32
      %c8_i32_21 = arith.constant 8 : i32
      %22 = arith.muli %21, %c8_i32_21 : i32
      %23 = tpu.assume_multiple %22, 8 : i32
      %24 = arith.index_cast %23 : i32 to index
      %c0_22 = arith.constant 0 : index
      %25 = vector.load %arg7[%24, %c0_22] : memref<64x128xf32, #tpu.memory_space<vmem>>, vector<8x128xf32>
      %c0_23 = arith.constant 0 : index
      %c0_24 = arith.constant 0 : index
      %26 = vector.load %arg8[%c0_23, %c0_24] : memref<8x32xbf16, #tpu.memory_space<vmem>>, vector<8x32xbf16>
      %c0_25 = arith.constant 0 : index
      %c0_26 = arith.constant 0 : index
      %c0_27 = arith.constant 0 : index
      %27 = vector.load %arg3[%c0_25, %c0_26, %c0_27] : memref<1x32x128xbf16, #tpu.memory_space<vmem>>, vector<1x32x128xbf16>
      %28 = vector.shape_cast %27 : vector<1x32x128xbf16> to vector<32x128xbf16>
      %cst_28 = arith.constant dense<0.000000e+00> : vector<8x128xf32>
      %29 = tpu.matmul %26, %28, %cst_28 {dimension_numbers = #tpu.dot_dimension_numbers<[1], [0], [0], [1], [0, 0, 1, 1], [], []>} : vector<8x32xbf16>, vector<32x128xbf16>, vector<8x128xf32> -> vector<8x128xf32>
      %30 = arith.addf %25, %29 : vector<8x128xf32>
      %31 = arith.negf %30 : vector<8x128xf32>
      %32 = math.exp %31 : vector<8x128xf32>
      %cst_29 = arith.constant 1.000000e+00 : f32
      %33 = vector.broadcast %cst_29 : f32 to vector<8x128xf32>
      %34 = arith.addf %33, %32 : vector<8x128xf32>
      %35 = arith.divf %33, %34 : vector<8x128xf32>
      %36 = math.tanh %30 : vector<8x128xf32>
      %37 = vector.extract_strided_slice %35 {offsets = [0, 0], sizes = [8, 32], strides = [1, 1]} : vector<8x128xf32> to vector<8x32xf32>
      %38 = vector.extract_strided_slice %35 {offsets = [0, 32], sizes = [8, 32], strides = [1, 1]} : vector<8x128xf32> to vector<8x32xf32>
      %39 = vector.extract_strided_slice %36 {offsets = [0, 64], sizes = [8, 32], strides = [1, 1]} : vector<8x128xf32> to vector<8x32xf32>
      %40 = vector.extract_strided_slice %35 {offsets = [0, 96], sizes = [8, 32], strides = [1, 1]} : vector<8x128xf32> to vector<8x32xf32>
      %c0_30 = arith.constant 0 : index
      %c0_31 = arith.constant 0 : index
      %41 = vector.load %arg9[%c0_30, %c0_31] : memref<8x32xf32, #tpu.memory_space<vmem>>, vector<8x32xf32>
      %42 = arith.mulf %38, %41 : vector<8x32xf32>
      %43 = arith.mulf %37, %39 : vector<8x32xf32>
      %44 = arith.addf %42, %43 : vector<8x32xf32>
      %45 = math.tanh %44 : vector<8x32xf32>
      %46 = arith.mulf %40, %45 : vector<8x32xf32>
      %c0_32 = arith.constant 0 : index
      %c0_33 = arith.constant 0 : index
      %47 = vector.load %arg9[%c0_32, %c0_33] : memref<8x32xf32, #tpu.memory_space<vmem>>, vector<8x32xf32>
      tpu.vector_store %arg9[%c0_32, %c0_33], %44 {strides = array<i32>} : memref<8x32xf32, #tpu.memory_space<vmem>>, vector<8x32xf32>,
      %48 = arith.truncf %46 : vector<8x32xf32> to vector<8x32xbf16>
      %c0_34 = arith.constant 0 : index
      %c0_35 = arith.constant 0 : index
      %49 = vector.load %arg8[%c0_34, %c0_35] : memref<8x32xbf16, #tpu.memory_space<vmem>>, vector<8x32xbf16>
      tpu.vector_store %arg8[%c0_34, %c0_35], %48 {strides = array<i32>} : memref<8x32xbf16, #tpu.memory_space<vmem>>, vector<8x32xbf16>,
      %50 = arith.index_cast %23 : i32 to index
      %c0_36 = arith.constant 0 : index
      %51 = vector.load %arg6[%50, %c0_36] : memref<64x32xbf16, #tpu.memory_space<vmem>>, vector<8x32xbf16>
      tpu.vector_store %arg6[%50, %c0_36], %48 {strides = array<i32>} : memref<64x32xbf16, #tpu.memory_space<vmem>>, vector<8x32xbf16>,
    }
    %c8_i32_17 = arith.constant 8 : i32
    %c3_i32 = arith.constant 3 : i32
    %17 = arith.cmpi eq, %arg0, %c3_i32 : i32
    %18 = arith.extui %17 : i1 to i32
    %c0_i32_18 = arith.constant 0 : i32
    %19 = arith.cmpi ne, %18, %c0_i32_18 : i32
    scf.if %19 {
      %c0_19 = arith.constant 0 : index
      %c0_20 = arith.constant 0 : index
      %20 = vector.load %arg6[%c0_19, %c0_20] : memref<64x32xbf16, #tpu.memory_space<vmem>>, vector<64x32xbf16>
      %21 = arith.extf %20 : vector<64x32xbf16> to vector<64x32xf32>
      %c0_21 = arith.constant 0 : index
      %c0_22 = arith.constant 0 : index
      %22 = vector.load %arg1[%c0_21, %c0_22] : memref<64x32xf32, #tpu.memory_space<vmem>>, vector<64x32xf32>
      %23 = arith.addf %21, %22 : vector<64x32xf32>
      %c0_23 = arith.constant 0 : index
      %c0_24 = arith.constant 0 : index
      %24 = vector.load %arg5[%c0_23, %c0_24] : memref<64x32xf32, #tpu.memory_space<vmem>>, vector<64x32xf32>
      tpu.vector_store %arg5[%c0_23, %c0_24], %23 {strides = array<i32>} : memref<64x32xf32, #tpu.memory_space<vmem>>, vector<64x32xf32>,
    } else {
    }
    return
  }
  func.func @transform_0(%arg0: i32) -> (i32, i32) {
    %c0_i32 = arith.constant 0 : i32
    %c0_i32_0 = arith.constant 0 : i32
    %c0_i32_1 = arith.constant 0 : i32
    return %c0_i32, %c0_i32_0 : i32, i32
  }
  func.func @transform_1(%arg0: i32) -> (i32, i32, i32) {
    %c0_i32 = arith.constant 0 : i32
    %c0_i32_0 = arith.constant 0 : i32
    %c0_i32_1 = arith.constant 0 : i32
    return %arg0, %c0_i32, %c0_i32_0 : i32, i32, i32
  }
  func.func @transform_2(%arg0: i32) -> (i32, i32, i32) {
    %c0_i32 = arith.constant 0 : i32
    %c0_i32_0 = arith.constant 0 : i32
    %c0_i32_1 = arith.constant 0 : i32
    return %arg0, %c0_i32, %c0_i32_0 : i32, i32, i32
  }
  func.func @transform_3(%arg0: i32) -> (i32, i32, i32) {
    %c0_i32 = arith.constant 0 : i32
    %c0_i32_0 = arith.constant 0 : i32
    %c0_i32_1 = arith.constant 0 : i32
    return %arg0, %c0_i32, %c0_i32_0 : i32, i32, i32
  }
  func.func @transform_4(%arg0: i32) -> (i32, i32) {
    %c0_i32 = arith.constant 0 : i32
    %c0_i32_0 = arith.constant 0 : i32
    %c0_i32_1 = arith.constant 0 : i32
    return %c0_i32, %c0_i32_0 : i32, i32
  }
}

</mosaic_0001>

<llo_original>
// kernel: residual_network_forward.1
$region0: #{residual_network_forward.1}
  #allocation0 [shape = 'u32[]', space=smem, size = 0x4, offset = 0x4, fixed_abs, tag = 'smem constant byte address 0x4 - core index']
  #allocation1 [shape = 'u32[72,128]{1,0:T(1,128)}', space=vmem, size = 0x9000, scoped, tag = 'internal scratch']
  #allocation2 [shape = 'bf16[64,32]{1,0:T(8,128)(2,1)}', space=vmem, size = 0x4000, scoped, tag = 'scratch operand']
  #allocation3 [shape = 'f32[64,128]{1,0:T(8,128)}', space=vmem, size = 0x8000, scoped, tag = 'scratch operand']
  #allocation4 [shape = 'bf16[8,32]{1,0:T(8,128)(2,1)}', space=vmem, size = 0x800, scoped, tag = 'scratch operand']
  #allocation5 [shape = 'f32[8,32]{1,0:T(8,128)}', space=vmem, size = 0x1000, scoped, tag = 'scratch operand']
  %s0 = inlined_call_operand.vmem [shape: f32[64,32], index: 0, kind: input, shape index: {}]
  %s1 = inlined_call_operand.vmem [shape: bf16[4,32,128], index: 1, kind: input, shape index: {}]
  %s2 = inlined_call_operand.vmem [shape: bf16[4,32,128], index: 2, kind: input, shape index: {}]
  %s3 = inlined_call_operand.vmem [shape: f32[4,1,128], index: 3, kind: input, shape index: {}]
  %s4 = inlined_call_operand.vmem [shape: f32[64,32], index: 4, kind: output, shape index: {}]
  %s5 = sld [smem:[#allocation0]]
  $region64: #{residual_network_forward.1} parent=0
    _
  %s7 = ssub.s32 1, %s5
  %s8 = scalar_select 0, %s7, %s5
  loop: start=0, step=1, limit=6
  $region2: #{residual_network_forward.1} parent=0 // loop_pre_header
    _
  $region3: #{residual_network_forward.1} parent=0 // loop_header
    %s10 = sphi 0, %s14
    %p11 = scmp.ge.s32.totalorder %s10, 6
    %s18 = sphi 0, %s18
    %s20 = sphi 0, %s18
    %s21 = sphi 0, %s20
    %s35 = sphi 0, %s21
    %s41 = sphi 0, %s43
    %s44 = sphi 0, %s41
    %s45 = sphi 0, %s44
    %s61 = sphi 0, %s45
    %s67 = sphi 0, %s69
    %s70 = sphi 0, %s67
    %s71 = sphi 0, %s70
    %s87 = sphi 0, %s71
    %s93 = sphi 0, %s95
    %s96 = sphi 0, %s93
    %s97 = sphi 0, %s96
    %s113 = sphi 0, %s97
    %s117 = sphi 0, %s117
    %s119 = sphi 0, %s117
    %s120 = sphi 0, %s119
    %s134 = sphi 0, %s120
  $region4: #{residual_network_forward.1} parent=0 // loop_header_branch
    %13 = sbr.rel (%p11) target = $region8
  $region5: #{residual_network_forward.1} parent=0 // loop_body
    %s15 = ssub.s32 %s10, 1
    %s16 = ssub.s32 %s10, 2
    %s17 = sadd.s32 %s10, 1
    %s19 = sadd.s32 %s18, 1
    %p22 = scmp.eq.s32.totalorder %s10, 3
    %p23 = scmp.ne.s32.totalorder %s18, %s20
    %p24 = scmp.eq.s32.totalorder %s10, 0
    %p25 = por %p23, %p24
    %p26 = scmp.ne.s32.totalorder %s18, %s20
    %p27 = scmp.eq.s32.totalorder %s15, 3
    %p28 = por %p26, %p27
    %p29 = scmp.ne.s32.totalorder %s20, %s21
    %p30 = scmp.eq.s32.totalorder %s15, 0
    %p31 = por %p29, %p30
    %p32 = scmp.ne.s32.totalorder %s20, %s21
    %p33 = scmp.eq.s32.totalorder %s16, 3
    %p34 = por %p32, %p33
    %p36 = scmp.ne.s32.totalorder %s21, %s35
    %p37 = scmp.eq.s32.totalorder %s16, 0
    %p38 = por %p36, %p37
    %s39 = ssub.s32 %s10, %s17
    %p40 = scmp.eq.s32.totalorder %s39, 0
    %s42 = sadd.s32 %s41, 1
    %s43 = scalar_select %p40, %s41, %s42
    %p46 = pneg %p40
    %p47 = scmp.eq.s32.totalorder %s10, 3
    %p48 = por %p46, %p47
    %p49 = scmp.ne.s32.totalorder %s41, %s44
    %p50 = scmp.eq.s32.totalorder %s10, 0
    %p51 = por %p49, %p50
    %p52 = scmp.ne.s32.totalorder %s41, %s44
    %p53 = scmp.eq.s32.totalorder %s15, 3
    %p54 = por %p52, %p53
    %p55 = scmp.ne.s32.totalorder %s44, %s45
    %p56 = scmp.eq.s32.totalorder %s15, 0
    %p57 = por %p55, %p56
    %p58 = scmp.ne.s32.totalorder %s44, %s45
    %p59 = scmp.eq.s32.totalorder %s16, 3
    %p60 = por %p58, %p59
    %p62 = scmp.ne.s32.totalorder %s45, %s61
    %p63 = scmp.eq.s32.totalorder %s16, 0
    %p64 = por %p62, %p63
    %s65 = ssub.s32 %s10, %s17
    %p66 = scmp.eq.s32.totalorder %s65, 0
    %s68 = sadd.s32 %s67, 1
    %s69 = scalar_select %p66, %s67, %s68
    %p72 = pneg %p66
    %p73 = scmp.eq.s32.totalorder %s10, 3
    %p74 = por %p72, %p73
    %p75 = scmp.ne.s32.totalorder %s67, %s70
    %p76 = scmp.eq.s32.totalorder %s10, 0
    %p77 = por %p75, %p76
    %p78 = scmp.ne.s32.totalorder %s67, %s70
    %p79 = scmp.eq.s32.totalorder %s15, 3
    %p80 = por %p78, %p79
    %p81 = scmp.ne.s32.totalorder %s70, %s71
    %p82 = scmp.eq.s32.totalorder %s15, 0
    %p83 = por %p81, %p82
    %p84 = scmp.ne.s32.totalorder %s70, %s71
    %p85 = scmp.eq.s32.totalorder %s16, 3
    %p86 = por %p84, %p85
    %p88 = scmp.ne.s32.totalorder %s71, %s87
    %p89 = scmp.eq.s32.totalorder %s16, 0
    %p90 = por %p88, %p89
    %s91 = ssub.s32 %s10, %s17
    %p92 = scmp.eq.s32.totalorder %s91, 0
    %s94 = sadd.s32 %s93, 1
    %s95 = scalar_select %p92, %s93, %s94
    %p98 = pneg %p92
    %p99 = scmp.eq.s32.totalorder %s10, 3
    %p100 = por %p98, %p99
    %p101 = scmp.ne.s32.totalorder %s93, %s96
    %p102 = scmp.eq.s32.totalorder %s10, 0
    %p103 = por %p101, %p102
    %p104 = scmp.ne.s32.totalorder %s93, %s96
    %p105 = scmp.eq.s32.totalorder %s15, 3
    %p106 = por %p104, %p105
    %p107 = scmp.ne.s32.totalorder %s96, %s97
    %p108 = scmp.eq.s32.totalorder %s15, 0
    %p109 = por %p107, %p108
    %p110 = scmp.ne.s32.totalorder %s96, %s97
    %p111 = scmp.eq.s32.totalorder %s16, 3
    %p112 = por %p110, %p111
    %p114 = scmp.ne.s32.totalorder %s97, %s113
    %p115 = scmp.eq.s32.totalorder %s16, 0
    %p116 = por %p114, %p115
    %s118 = sadd.s32 %s117, 1
    %p121 = scmp.eq.s32.totalorder %s10, 3
    %p122 = scmp.ne.s32.totalorder %s117, %s119
    %p123 = scmp.eq.s32.totalorder %s10, 0
    %p124 = por %p122, %p123
    %p125 = scmp.ne.s32.totalorder %s117, %s119
    %p126 = scmp.eq.s32.totalorder %s15, 3
    %p127 = por %p125, %p126
    %p128 = scmp.ne.s32.totalorder %s119, %s120
    %p129 = scmp.eq.s32.totalorder %s15, 0
    %p130 = por %p128, %p129
    %p131 = scmp.ne.s32.totalorder %s119, %s120
    %p132 = scmp.eq.s32.totalorder %s16, 3
    %p133 = por %p131, %p132
    %p135 = scmp.ne.s32.totalorder %s120, %s134
    %p136 = scmp.eq.s32.totalorder %s16, 0
    %p137 = por %p135, %p136
    %p138 = scmp.le.s32.totalorder 1, %s10
    %p139 = scmp.lt.s32.totalorder %s10, 5
    %p140 = pnand %p138, %p139
    %p141 = pneg %p140
    // Predicated region
    $region9: #{residual_network_forward.1} parent=5 // pred_check
      _
    $region10: #{residual_network_forward.1} parent=5 // pred_check_branch
      %143 = sbr.rel (%p140) target = $region12
    $region11: #{residual_network_forward.1} parent=5 // pred_region
      %s144 = ssub.s32 %s10, 1
      // Predicated region
      $region13: #{residual_network_forward.1} parent=11 // pred_check
        %p145 = pneg %p31
      $region14: #{residual_network_forward.1} parent=11 // pred_check_branch
        %147 = sbr.rel (%p145) target = $region16
      $region15: #{residual_network_forward.1} parent=11 // pred_region
        _
      $region16: #{residual_network_forward.1} parent=11 // pred_fallthru
        _
    $region12: #{residual_network_forward.1} parent=5 // pred_fallthru
      _
    %p148 = scmp.lt.s32.totalorder %s10, 4
    // Predicated region
    $region17: #{residual_network_forward.1} parent=5 // pred_check
      %p149 = pneg %p148
    $region18: #{residual_network_forward.1} parent=5 // pred_check_branch
      %151 = sbr.rel (%p149) target = $region20
    $region19: #{residual_network_forward.1} parent=5 // pred_region
      // Predicated region
      $region21: #{residual_network_forward.1} parent=19 // pred_check
        %p152 = pneg %p51
      $region22: #{residual_network_forward.1} parent=19 // pred_check_branch
        %154 = sbr.rel (%p152) target = $region24
      $region23: #{residual_network_forward.1} parent=19 // pred_region
        %p155 = scmp.lt.s32.totalorder %s10, 3
        %s156 = scalar_select %p155, %s10, 3
        %s157 = smul.addr %s156, 4
        %s158 = smul.addr %s157, 4
        %s159 = scalar_lea.vmem %s1, %s158
      $region24: #{residual_network_forward.1} parent=19 // pred_fallthru
        _
      // Predicated region
      $region25: #{residual_network_forward.1} parent=19 // pred_check
        %p160 = pneg %p77
      $region26: #{residual_network_forward.1} parent=19 // pred_check_branch
        %162 = sbr.rel (%p160) target = $region28
      $region27: #{residual_network_forward.1} parent=19 // pred_region
        %p163 = scmp.lt.s32.totalorder %s10, 3
        %s164 = scalar_select %p163, %s10, 3
        %s165 = smul.addr %s164, 4
        %s166 = smul.addr %s165, 4
        %s167 = scalar_lea.vmem %s2, %s166
      $region28: #{residual_network_forward.1} parent=19 // pred_fallthru
        _
      // Predicated region
      $region29: #{residual_network_forward.1} parent=19 // pred_check
        %p168 = pneg %p103
      $region30: #{residual_network_forward.1} parent=19 // pred_check_branch
        %170 = sbr.rel (%p168) target = $region32
      $region31: #{residual_network_forward.1} parent=19 // pred_region
        %p171 = scmp.lt.s32.totalorder %s10, 3
        %s172 = scalar_select %p171, %s10, 3
        %s173 = scalar_lea.vmem %s3, %s172
      $region32: #{residual_network_forward.1} parent=19 // pred_fallthru
        _
    $region20: #{residual_network_forward.1} parent=5 // pred_fallthru
      _
    %p174 = scmp.le.s32.totalorder 1, %s10
    %p175 = scmp.lt.s32.totalorder %s10, 5
    %p176 = pnand %p174, %p175
    %p177 = pneg %p176
    // Predicated region
    $region33: #{residual_network_forward.1} parent=5 // pred_check
      _
    $region34: #{residual_network_forward.1} parent=5 // pred_check_branch
      %179 = sbr.rel (%p176) target = $region36
    $region35: #{residual_network_forward.1} parent=5 // pred_region
      %s180 = ssub.s32 %s10, 1
      %p181 = pneg %p31
      %p182 = pneg %p28
      %p183 = scmp.lt.s32.totalorder %s15, 3
      %s184 = scalar_select %p183, %s15, 3
      %s185 = smul.addr %s184, 4
      %s186 = smul.addr %s185, 4
      %s187 = scalar_lea.vmem %s1, %s186
      %p188 = pneg %p57
      %p189 = pneg %p54
      %p190 = scmp.lt.s32.totalorder %s15, 3
      %s191 = scalar_select %p190, %s15, 3
      %s192 = smul.addr %s191, 4
      %s193 = smul.addr %s192, 4
      %s194 = scalar_lea.vmem %s2, %s193
      %p195 = pneg %p83
      %p196 = pneg %p80
      %p197 = scmp.lt.s32.totalorder %s15, 3
      %s198 = scalar_select %p197, %s15, 3
      %s199 = scalar_lea.vmem %s3, %s198
      %p200 = pneg %p109
      %p201 = pneg %p106
      %p202 = pneg %p130
      %p203 = pneg %p127
      %p204 = scmp.lt.s32.totalorder %s15, 3
      %s205 = scalar_select %p204, %s15, 3
      %s206 = smul.addr %s205, 4
      %s207 = smul.addr %s206, 4
      %s208 = scalar_lea.vmem %s1, %s207
      %p209 = scmp.lt.s32.totalorder %s15, 3
      %s210 = scalar_select %p209, %s15, 3
      %s211 = smul.addr %s210, 4
      %s212 = smul.addr %s211, 4
      %s213 = scalar_lea.vmem %s2, %s212
      %p214 = scmp.lt.s32.totalorder %s15, 3
      %s215 = scalar_select %p214, %s15, 3
      %s216 = scalar_lea.vmem %s3, %s215
      %p218 = scmp.eq.s32.totalorder %s15, 0
      // Predicated region
      $region37: #{residual_network_forward.1} parent=35 // pred_check
        %p219 = pneg %p218
      $region38: #{residual_network_forward.1} parent=35 // pred_check_branch
        %221 = sbr.rel (%p219) target = $region40
      $region39: #{residual_network_forward.1} parent=35 // pred_region
        %v222 = vld [vmem:[%s0] sm:$0xff]
        %v223 = vld [vmem:[%s0 + $0x8] sm:$0xff]
        %v224 = vld [vmem:[%s0 + $0x10] sm:$0xff]
        %v225 = vld [vmem:[%s0 + $0x18] sm:$0xff]
        %v226 = vld [vmem:[%s0 + $0x20] sm:$0xff]
        %v227 = vld [vmem:[%s0 + $0x28] sm:$0xff]
        %v228 = vld [vmem:[%s0 + $0x30] sm:$0xff]
        %v229 = vld [vmem:[%s0 + $0x38] sm:$0xff]
        %v230 = vpack.c.bf16 %v222, %v222
        %v231 = vpack.c.bf16 %v223, %v223
        %v232 = vpack.c.bf16 %v224, %v224
        %v233 = vpack.c.bf16 %v225, %v225
        %v234 = vpack.c.bf16 %v226, %v226
        %v235 = vpack.c.bf16 %v227, %v227
        %v236 = vpack.c.bf16 %v228, %v228
        %v237 = vpack.c.bf16 %v229, %v229
        %vm238 = vcmask 257024
        %239 = vst.msk [vmem:[#allocation2] sm:$0xf] %vm238, %v230
        %240 = vst.msk [vmem:[#allocation2 + $0x4] sm:$0xf] %vm238, %v231
        %241 = vst.msk [vmem:[#allocation2 + $0x8] sm:$0xf] %vm238, %v232
        %242 = vst.msk [vmem:[#allocation2 + $0xc] sm:$0xf] %vm238, %v233
        %243 = vst.msk [vmem:[#allocation2 + $0x10] sm:$0xf] %vm238, %v234
        %244 = vst.msk [vmem:[#allocation2 + $0x14] sm:$0xf] %vm238, %v235
        %245 = vst.msk [vmem:[#allocation2 + $0x18] sm:$0xf] %vm238, %v236
        %246 = vst.msk [vmem:[#allocation2 + $0x1c] sm:$0xf] %vm238, %v237
      $region40: #{residual_network_forward.1} parent=35 // pred_fallthru
        _
      %v247 = vld [vmem:[#allocation2] sm:$0xf]
      %v248 = vld [vmem:[#allocation2 + $0x4] sm:$0xf]
      %v249 = vld [vmem:[#allocation2 + $0x8] sm:$0xf]
      %v250 = vld [vmem:[#allocation2 + $0xc] sm:$0xf]
      %v251 = vld [vmem:[#allocation2 + $0x10] sm:$0xf]
      %v252 = vld [vmem:[#allocation2 + $0x14] sm:$0xf]
      %v253 = vld [vmem:[#allocation2 + $0x18] sm:$0xf]
      %v254 = vld [vmem:[#allocation2 + $0x1c] sm:$0xf]
      %v255 = vld [vmem:[%s208] sm:$0xf]
      %v256 = vld [vmem:[%s208 + $0x4] sm:$0xf]
      %v257 = vld [vmem:[%s208 + $0x8] sm:$0xf]
      %v258 = vld [vmem:[%s208 + $0xc] sm:$0xf]
      %v259 = vld [vmem:[%s216] sm:$0x1]
      %v261 = vperm.slane %v259, 0
      %v271 = vunpack.c.l.b16 %v247
      %v272 = vunpack.c.l.b16 %v248
      %v273 = vunpack.c.l.b16 %v249
      %v274 = vunpack.c.l.b16 %v250
      %v275 = vunpack.c.l.b16 %v251
      %v276 = vunpack.c.l.b16 %v252
      %v277 = vunpack.c.l.b16 %v253
      %v278 = vunpack.c.l.b16 %v254
      %v279 = vpack.c.b16 %v272, %v271
      %v280 = vpack.c.b16 %v274, %v273
      %v281 = vpack.c.b16 %v276, %v275
      %v282 = vpack.c.b16 %v278, %v277
      %v287 = vunpack.c.l.b16 %v255
      %v288 = vunpack.c.l.b16 %v256
      %v289 = vunpack.c.l.b16 %v257
      %v290 = vunpack.c.l.b16 %v258
      %v291 = vpack.c.b16 %v288, %v287
      %v292 = vpack.c.b16 %v290, %v289
      %vm295 = vcmask 261120
      %v297 = vsel %vm295, %v279, 0
      %v300 = vsel %vm295, %v280, 0
      %v303 = vsel %vm295, %v281, 0
      %v306 = vsel %vm295, %v282, 0
      %308 = vmatpush.bf16.msra.mxu0 0
      %309 = vmatpush.bf16.msra.mxu0 0
      %310 = vmatpush.bf16.msra.mxu0 0
      %311 = vmatpush.bf16.msra.mxu0 0
      %312 = vmatpush.bf16.msra.mxu0 0
      %313 = vmatpush.bf16.msra.mxu0 0
      %314 = vmatpush.bf16.msra.mxu0 %v292
      %315 = vmatpush.bf16.msra.mxu0 %v291
      %316 = vmatmul.bf16.gmra.mxu0 %v297
      %v317 = vpop.f32.mrf.mxu0
      %v318 = vadd.f32 %v261, %v317
      %v319 = vpop.f32.mrf.mxu0
      %v320 = vadd.f32 %v261, %v319
      %321 = vmatmul.bf16.gmra.mxu0 %v300
      %v322 = vpop.f32.mrf.mxu0
      %v323 = vadd.f32 %v261, %v322
      %v324 = vpop.f32.mrf.mxu0
      %v325 = vadd.f32 %v261, %v324
      %326 = vmatmul.bf16.gmra.mxu0 %v303
      %v327 = vpop.f32.mrf.mxu0
      %v328 = vadd.f32 %v261, %v327
      %v329 = vpop.f32.mrf.mxu0
      %v330 = vadd.f32 %v261, %v329
      %331 = vmatmul.bf16.gmra.mxu0 %v306
      %v332 = vpop.f32.mrf.mxu0
      %v333 = vadd.f32 %v261, %v332
      %v334 = vpop.f32.mrf.mxu0
      %v335 = vadd.f32 %v261, %v334
      %336 = vdwg.mxu0
      %337 = vst [vmem:[#allocation3] sm:$0xff] %v318
      %338 = vst [vmem:[#allocation3 + $0x8] sm:$0xff] %v320
      %339 = vst [vmem:[#allocation3 + $0x10] sm:$0xff] %v323
      %340 = vst [vmem:[#allocation3 + $0x18] sm:$0xff] %v325
      %341 = vst [vmem:[#allocation3 + $0x20] sm:$0xff] %v328
      %342 = vst [vmem:[#allocation3 + $0x28] sm:$0xff] %v330
      %343 = vst [vmem:[#allocation3 + $0x30] sm:$0xff] %v333
      %344 = vst [vmem:[#allocation3 + $0x38] sm:$0xff] %v335
      %vm345 = vcmask 257024
      %346 = vst.msk [vmem:[#allocation4] sm:$0xf] %vm345, 0
      %347 = vst.msk [vmem:[#allocation5] sm:$0xff] %vm295, 0.0
      loop: start=0, step=1, limit=8
      $region41: #{residual_network_forward.1} parent=35 // loop_pre_header
        _
      $region42: #{residual_network_forward.1} parent=35 // loop_header
        %s349 = sphi 0, %s353
        %p350 = scmp.ge.s32.totalorder %s349, 8
      $region43: #{residual_network_forward.1} parent=35 // loop_header_branch
        %352 = sbr.rel (%p350) target = $region47
      $region44: #{residual_network_forward.1} parent=35 // loop_body
        %s354 = smul.u32 %s349, 8
        %s355 = scalar_lea.vmem [#allocation3], %s354
        %v356 = vld [vmem:[%s355] sm:$0xff]
        %v357 = vld [vmem:[#allocation4] sm:$0xf]
        %v358 = vld [vmem:[%s213] sm:$0xf]
        %v359 = vld [vmem:[%s213 + $0x4] sm:$0xf]
        %v360 = vld [vmem:[%s213 + $0x8] sm:$0xf]
        %v361 = vld [vmem:[%s213 + $0xc] sm:$0xf]
        %v366 = vunpack.c.l.b16 %v358
        %v367 = vunpack.c.l.b16 %v359
        %v368 = vunpack.c.l.b16 %v360
        %v369 = vunpack.c.l.b16 %v361
        %v370 = vpack.c.b16 %v367, %v366
        %v371 = vpack.c.b16 %v369, %v368
        %v375 = vsel %vm295, %v357, 0
        %377 = vmatpush.bf16.msra.mxu0 0
        %378 = vmatpush.bf16.msra.mxu0 0
        %379 = vmatpush.bf16.msra.mxu0 0
        %380 = vmatpush.bf16.msra.mxu0 0
        %381 = vmatpush.bf16.msra.mxu0 0
        %382 = vmatpush.bf16.msra.mxu0 0
        %383 = vmatpush.bf16.msra.mxu0 %v371
        %384 = vmatpush.bf16.msra.mxu0 %v370
        %385 = vmatmul.bf16.gmra.mxu0 %v375
        %v386 = vpop.f32.mrf.mxu0
        %v387 = vadd.f32 0.0, %v386
        %v388 = vpop.f32.mrf.mxu0
        %389 = vdwg.mxu0
        %v390 = vadd.f32 %v356, %v387
        %v391 = vxor.u32 %v390, 2147483648
        %v392 = vmul.f32 %v391, 1.442695
        %v393 = vpow.pop %v392
        %v394 = vadd.f32 %v393, 1.0
        %v395 = vrcp.pop %v394
        %v396 = vmul.f32 %v394, %v395
        %v397 = vsub.f32 1.0, %v396
        %v398 = vmul.f32 %v395, %v397
        %v399 = vadd.f32 %v395, %v398
        %vm400 = vweird.f32 %v394
        %vm401 = vweird.f32 %v395
        %vm402 = vmor %vm400, %vm401
        %v403 = vsel %vm402, %v395, %v399
        %v404 = vand.u32 2147483647, %v394
        %vm405 = vcmp.eq.f32.partialorder %v404, 8.507059e+37
        %v406 = vand.u32 %v394, 2147483648
        %v407 = vor.u32 1.1754944e-38, %v406
        %v408 = vsel %vm405, %v407, %v403
        %v409 = vmul.f32 1.0, %v408
        %v410 = vtanh.pop %v390
        %v411 = vld [vmem:[#allocation5] sm:$0xff]
        %413 = vrot.lane.b32.xlu0 %v411, 32
        %v414 = vpop.permute.xlu0 %413
        %v416 = vmul.f32 %v409, %v414
        %418 = vrot.lane.b32.xlu0 %v410, 64
        %v419 = vpop.permute.xlu0 %418
        %v421 = vmul.f32 %v409, %v419
        %423 = vrot.lane.b32.xlu0 %v421, 32
        %v424 = vpop.permute.xlu0 %423
        %v426 = vadd.f32 %v416, %v424
        %v427 = vtanh.pop %v426
        %429 = vrot.lane.b32.xlu0 %v427, 64
        %v430 = vpop.permute.xlu0 %429
        %v432 = vmul.f32 %v409, %v430
        %434 = vrot.lane.b32.xlu0 %v426, 96
        %v435 = vpop.permute.xlu0 %434
        %437 = vst.msk [vmem:[#allocation5] sm:$0xff] %vm295, %v435
        %v438 = vpack.c.bf16 %v432, %v432
        %440 = vrot.lane.b32.xlu0 %v438, 32
        %v441 = vpop.permute.xlu0 %440
        %443 = vst.msk [vmem:[#allocation4] sm:$0xf] %vm345, %v441
        %s444 = sshra.s32 %s354, 3
        %s445 = sand.u32 %s354, 7
        %s446 = smul.addr %s444, 4
        %s447 = scalar_lea.vmem [#allocation2], %s446
        %448 = vst.msk [vmem:[%s447] sm:$0xf] %vm345, %v441
      $region45: #{residual_network_forward.1} parent=35 // loop_footer
        %s353 = sadd.s32 1, %s349
      $region46: #{residual_network_forward.1} parent=35 // loop_footer_branch
        %348 = sbr.rel target = $region42
      $region47: #{residual_network_forward.1} parent=35 // loop_exit
        _
      %p449 = scmp.eq.s32.totalorder %s15, 3
      // Predicated region
      $region48: #{residual_network_forward.1} parent=35 // pred_check
        %p450 = pneg %p449
      $region49: #{residual_network_forward.1} parent=35 // pred_check_branch
        %452 = sbr.rel (%p450) target = $region51
      $region50: #{residual_network_forward.1} parent=35 // pred_region
        %v453 = vld [vmem:[#allocation2] sm:$0xf]
        %v454 = vld [vmem:[#allocation2 + $0x4] sm:$0xf]
        %v455 = vld [vmem:[#allocation2 + $0x8] sm:$0xf]
        %v456 = vld [vmem:[#allocation2 + $0xc] sm:$0xf]
        %v457 = vld [vmem:[#allocation2 + $0x10] sm:$0xf]
        %v458 = vld [vmem:[#allocation2 + $0x14] sm:$0xf]
        %v459 = vld [vmem:[#allocation2 + $0x18] sm:$0xf]
        %v460 = vld [vmem:[#allocation2 + $0x1c] sm:$0xf]
        %v461 = vunpack.c.l.bf16 %v453
        %v462 = vunpack.c.l.bf16 %v454
        %v463 = vunpack.c.l.bf16 %v455
        %v464 = vunpack.c.l.bf16 %v456
        %v465 = vunpack.c.l.bf16 %v457
        %v466 = vunpack.c.l.bf16 %v458
        %v467 = vunpack.c.l.bf16 %v459
        %v468 = vunpack.c.l.bf16 %v460
        %v469 = vld [vmem:[%s0] sm:$0xff]
        %v470 = vld [vmem:[%s0 + $0x8] sm:$0xff]
        %v471 = vld [vmem:[%s0 + $0x10] sm:$0xff]
        %v472 = vld [vmem:[%s0 + $0x18] sm:$0xff]
        %v473 = vld [vmem:[%s0 + $0x20] sm:$0xff]
        %v474 = vld [vmem:[%s0 + $0x28] sm:$0xff]
        %v475 = vld [vmem:[%s0 + $0x30] sm:$0xff]
        %v476 = vld [vmem:[%s0 + $0x38] sm:$0xff]
        %v477 = vadd.f32 %v461, %v469
        %v478 = vadd.f32 %v462, %v470
        %v479 = vadd.f32 %v463, %v471
        %v480 = vadd.f32 %v464, %v472
        %v481 = vadd.f32 %v465, %v473
        %v482 = vadd.f32 %v466, %v474
        %v483 = vadd.f32 %v467, %v475
        %v484 = vadd.f32 %v468, %v476
        %485 = vst.msk [vmem:[%s4] sm:$0xff] %vm295, %v477
        %486 = vst.msk [vmem:[%s4 + $0x8] sm:$0xff] %vm295, %v478
        %487 = vst.msk [vmem:[%s4 + $0x10] sm:$0xff] %vm295, %v479
        %488 = vst.msk [vmem:[%s4 + $0x18] sm:$0xff] %vm295, %v480
        %489 = vst.msk [vmem:[%s4 + $0x20] sm:$0xff] %vm295, %v481
        %490 = vst.msk [vmem:[%s4 + $0x28] sm:$0xff] %vm295, %v482
        %491 = vst.msk [vmem:[%s4 + $0x30] sm:$0xff] %vm295, %v483
        %492 = vst.msk [vmem:[%s4 + $0x38] sm:$0xff] %vm295, %v484
      $region51: #{residual_network_forward.1} parent=35 // pred_fallthru
        _
      // Predicated region
      $region52: #{residual_network_forward.1} parent=35 // pred_check
        %p493 = pneg %p127
      $region53: #{residual_network_forward.1} parent=35 // pred_check_branch
        %495 = sbr.rel (%p493) target = $region55
      $region54: #{residual_network_forward.1} parent=35 // pred_region
        _
      $region55: #{residual_network_forward.1} parent=35 // pred_fallthru
        _
      // Predicated region
      $region56: #{residual_network_forward.1} parent=35 // pred_check
        %p496 = pneg %p127
      $region57: #{residual_network_forward.1} parent=35 // pred_check_branch
        %498 = sbr.rel (%p496) target = $region59
      $region58: #{residual_network_forward.1} parent=35 // pred_region
        _
      $region59: #{residual_network_forward.1} parent=35 // pred_fallthru
        _
    $region36: #{residual_network_forward.1} parent=5 // pred_fallthru
      _
    %p499 = scmp.le.s32.totalorder 2, %s10
    // Predicated region
    $region60: #{residual_network_forward.1} parent=5 // pred_check
      %p500 = pneg %p499
    $region61: #{residual_network_forward.1} parent=5 // pred_check_branch
      %502 = sbr.rel (%p500) target = $region63
    $region62: #{residual_network_forward.1} parent=5 // pred_region
      %s503 = ssub.s32 %s10, 2
    $region63: #{residual_network_forward.1} parent=5 // pred_fallthru
      _
  $region6: #{residual_network_forward.1} parent=0 // loop_footer
    %s14 = sadd.s32 1, %s10
  $region7: #{residual_network_forward.1} parent=0 // loop_footer_branch
    %9 = sbr.rel target = $region3
  $region8: #{residual_network_forward.1} parent=0 // loop_exit
    _

</llo_original>
